<compile_context>
chip_gen: v5e
topology: v5e:2x2
jax: 0.10.0
libtpu: 0.0.40
codegen_flags: <defaults>
</compile_context>

<pallas_src>
import functools

import jax
import jax.numpy as jnp
from jax.experimental import pallas as pl
from jax.experimental.pallas import tpu as pltpu

_SOFTPLUS_THRESHOLD = 20.0


def _mish_kernel(x_ref, o_ref, *, narrow: bool):
    xf = x_ref[...].astype(jnp.float32)
    # t = exp(x), clamped so t^2 stays finite in f32 (exp(20)^2 ~ 2.4e17).
    t = jnp.exp(jnp.minimum(xf, _SOFTPLUS_THRESHOLD))          # EUP op #1
    num = t * (t + 2.0)                                        # VALU
    den = num + 2.0                                            # VALU
    # tanh(softplus(x)) == num / den.  Approximate reciprocal on the EUP,
    # refined with Newton-Raphson on the VALU.
    r = pl.reciprocal(den, approx=True)                        # EUP op #2
    r = r * (2.0 - den * r)                                     # Newton #1
    if not narrow:
        # Second refinement only for f32 I/O, where HBM (not VALU) is binding
        # and the extra ops are free filler.
        r = r * (2.0 - den * r)                                 # Newton #2
    y = jnp.where(xf > _SOFTPLUS_THRESHOLD, xf, xf * (num * r))
    o_ref[...] = y.astype(o_ref.dtype)


def _mish_jnp(x):
    xf = x.astype(jnp.float32)
    return (xf * jnp.tanh(jax.nn.softplus(xf))).astype(x.dtype)


def _mish_pallas_2d(x2d: jax.Array, *, block_bytes: int) -> jax.Array:
    """Run the mish kernel over a lane-dense 2D slab (rows, lanes)."""
    rows, lanes = x2d.shape
    dtype = x2d.dtype
    itemsize = jnp.dtype(dtype).itemsize
    # Native sublane packing: 8 for f32, 16 for bf16, 32 for int8/fp8.
    sublane = max(8, 32 // itemsize)
    narrow = itemsize < 4

    row_bytes = lanes * itemsize
    # Cap block size so 4x block (in+out, double-buffered) stays <= 32 MiB of
    # buffers -> fits v7x's 64 MiB physical VMEM with headroom.
    bb = min(block_bytes, 8 * 1024 * 1024)
    tr = max(sublane, (bb // row_bytes) // sublane * sublane)

    total_bytes = rows * row_bytes
    if total_bytes > (1 << 20):
        # Keep the grid at least 4 steps deep: DMA/compute overlap + work for
        # both v7x TensorCores via the "parallel" dimension.
        max_tr = -(-rows // 4)
        max_tr = -(-max_tr // sublane) * sublane
        tr = min(tr, max_tr)

    if tr >= rows:
        tr = rows
    grid = (pl.cdiv(rows, tr),)

    block_b = tr * lanes * itemsize
    # Explicit VMEM limit: cover 4x block (double-buffered in+out) + headroom,
    # clamped to 48 MiB so it is safe on v7x and overrides v5e's 16 MiB default.
    vmem_limit = min(48 * 1024 * 1024,
                     max(32 * 1024 * 1024, 4 * block_b + 8 * 1024 * 1024))

    n_elem = rows * lanes
    cost = pl.CostEstimate(
        flops=10 * n_elem,
        transcendentals=2 * n_elem,
        bytes_accessed=2 * itemsize * n_elem,
    )

    return pl.pallas_call(
        functools.partial(_mish_kernel, narrow=narrow),
        out_shape=jax.ShapeDtypeStruct((rows, lanes), dtype),
        grid_spec=pltpu.PrefetchScalarGridSpec(
            num_scalar_prefetch=0,
            grid=grid,
            in_specs=[pl.BlockSpec((tr, lanes), lambda i: (i, 0))],
            out_specs=pl.BlockSpec((tr, lanes), lambda i: (i, 0)),
        ),
        compiler_params=pltpu.CompilerParams(
            dimension_semantics=("parallel",),
            vmem_limit_bytes=vmem_limit,
        ),
        cost_estimate=cost,
    )(x2d)


def mish_pallas(x: jax.Array, *, block_bytes: int = 8 * 1024 * 1024) -> jax.Array:
    """Elementwise mish on an arbitrary-shaped array via a Pallas TPU kernel."""
    orig_shape = x.shape
    n = x.size
    if n == 0:
        return x

    # Pick the widest lane width that divides n exactly (reshape only, no copy).
    lanes = None
    for cand in (1024, 512, 256, 128):
        if n % cand == 0:
            lanes = cand
            break

    x_flat = jnp.ravel(x)
    if lanes is not None:
        out2d = _mish_pallas_2d(x_flat.reshape(n // lanes, lanes),
                                block_bytes=block_bytes)
        return out2d.reshape(orig_shape)

    # Ragged fallback: run the kernel on the 128-aligned prefix and handle the
    # <128-element tail with plain jnp (no O(n) pad + slice of the full array).
    lanes = 128
    n_main = (n // lanes) * lanes
    if n_main == 0:
        return _mish_jnp(x_flat).reshape(orig_shape)
    main = _mish_pallas_2d(x_flat[:n_main].reshape(n_main // lanes, lanes),
                           block_bytes=block_bytes)
    tail = _mish_jnp(x_flat[n_main:])
    return jnp.concatenate([main.reshape(-1), tail]).reshape(orig_shape)


def mish_ref(x):
    xf = x.astype(jnp.float32)
    return (xf * jnp.tanh(jax.nn.softplus(xf))).astype(x.dtype)


if __name__ == "__main__":
    key = jax.random.PRNGKey(0)

    # Primary check: NCHW (2, 4, 16, 16), consistent with Mish's (N, *) contract.
    x = jax.random.normal(key, (2, 4, 16, 16), dtype=jnp.float32) * 5.0
    out = jax.block_until_ready(mish_pallas(x))
    assert out.shape == x.shape and out.dtype == x.dtype
    assert jnp.allclose(out, mish_ref(x), atol=1e-5, rtol=1e-5)

    # Mid-size f32: exercises the multi-step grid (>= 4 steps) path.
    x_big = jax.random.normal(jax.random.PRNGKey(1), (8, 64, 64, 16),
                              dtype=jnp.float32) * 4.0
    out_big = jax.block_until_ready(mish_pallas(x_big))
    assert jnp.allclose(out_big, mish_ref(x_big), atol=1e-5, rtol=1e-5)

    # bf16: exercises the narrow-dtype (single Newton step, sublane=16) path.
    x_bf = (jax.random.normal(jax.random.PRNGKey(2), (4, 128, 128)) * 3.0
            ).astype(jnp.bfloat16)
    out_bf = jax.block_until_ready(mish_pallas(x_bf))
    assert out_bf.dtype == jnp.bfloat16
    assert jnp.allclose(out_bf.astype(jnp.float32),
                        mish_ref(x_bf).astype(jnp.float32),
                        atol=2e-2, rtol=2e-2)

    # Ragged sizes: <128-element array (pure jnp) and aligned-prefix + tail.
    x_tiny = jax.random.normal(jax.random.PRNGKey(3), (2, 7, 5), dtype=jnp.float32)
    out_tiny = jax.block_until_ready(mish_pallas(x_tiny))
    assert jnp.allclose(out_tiny, mish_ref(x_tiny), atol=1e-5, rtol=1e-5)

    x_rag = jax.random.normal(jax.random.PRNGKey(4), (3, 67), dtype=jnp.float32)
    out_rag = jax.block_until_ready(mish_pallas(x_rag))
    assert jnp.allclose(out_rag, mish_ref(x_rag), atol=1e-5, rtol=1e-5)

    print("KERNEL_OK")
</pallas_src>

<mosaic_0001>
module attributes {stable_mosaic.version = 11 : i64} {
  func.func @_mish_kernel(%arg0: i32, %arg1: memref<2x1024xf32, #tpu.memory_space<vmem>>, %arg2: memref<2x1024xf32, #tpu.memory_space<vmem>>) attributes {dimension_semantics = [#tpu.dimension_semantics<parallel>], iteration_bounds = array<i64: 1>, scalar_prefetch = 0 : i64, scratch_operands = 0 : i64, tpu.core_type = #tpu.core_type<tc>, window_params = [{transform_indices = @transform_0, window_bounds = array<i64: 2, 1024>}, {transform_indices = @transform_1, window_bounds = array<i64: 2, 1024>}]} {
    %c0 = arith.constant 0 : index
    %c0_0 = arith.constant 0 : index
    %0 = vector.load %arg1[%c0, %c0_0] : memref<2x1024xf32, #tpu.memory_space<vmem>>, vector<2x1024xf32>
    %cst = arith.constant 2.000000e+01 : f32
    %1 = vector.broadcast %cst : f32 to vector<2x1024xf32>
    %2 = arith.minimumf %0, %1 : vector<2x1024xf32>
    %3 = math.exp %2 : vector<2x1024xf32>
    %cst_1 = arith.constant 2.000000e+00 : f32
    %4 = vector.broadcast %cst_1 : f32 to vector<2x1024xf32>
    %5 = arith.addf %3, %4 : vector<2x1024xf32>
    %6 = arith.mulf %3, %5 : vector<2x1024xf32>
    %cst_2 = arith.constant 2.000000e+00 : f32
    %7 = vector.broadcast %cst_2 : f32 to vector<2x1024xf32>
    %8 = arith.addf %6, %7 : vector<2x1024xf32>
    %9 = tpu.reciprocal %8 {approx = true} : vector<2x1024xf32> -> vector<2x1024xf32>
    %10 = arith.mulf %8, %9 : vector<2x1024xf32>
    %cst_3 = arith.constant 2.000000e+00 : f32
    %11 = vector.broadcast %cst_3 : f32 to vector<2x1024xf32>
    %12 = arith.subf %11, %10 : vector<2x1024xf32>
    %13 = arith.mulf %9, %12 : vector<2x1024xf32>
    %14 = arith.mulf %8, %13 : vector<2x1024xf32>
    %cst_4 = arith.constant 2.000000e+00 : f32
    %15 = vector.broadcast %cst_4 : f32 to vector<2x1024xf32>
    %16 = arith.subf %15, %14 : vector<2x1024xf32>
    %17 = arith.mulf %13, %16 : vector<2x1024xf32>
    %cst_5 = arith.constant 2.000000e+01 : f32
    %18 = vector.broadcast %cst_5 : f32 to vector<2x1024xf32>
    %19 = arith.cmpf ogt, %0, %18 : vector<2x1024xf32>
    %20 = arith.mulf %6, %17 : vector<2x1024xf32>
    %21 = arith.mulf %0, %20 : vector<2x1024xf32>
    %22 = arith.select %19, %0, %21 : vector<2x1024xi1>, vector<2x1024xf32>
    %c0_6 = arith.constant 0 : index
    %c0_7 = arith.constant 0 : index
    %23 = vector.load %arg2[%c0_6, %c0_7] : memref<2x1024xf32, #tpu.memory_space<vmem>>, vector<2x1024xf32>
    tpu.vector_store %arg2[%c0_6, %c0_7], %22 {strides = array<i32>} : memref<2x1024xf32, #tpu.memory_space<vmem>>, vector<2x1024xf32>,
    return
  }
  func.func @transform_0(%arg0: i32) -> (i32, i32) {
    %c0_i32 = arith.constant 0 : i32
    %c0_i32_0 = arith.constant 0 : i32
    return %arg0, %c0_i32 : i32, i32
  }
  func.func @transform_1(%arg0: i32) -> (i32, i32) {
    %c0_i32 = arith.constant 0 : i32
    %c0_i32_0 = arith.constant 0 : i32
    return %arg0, %c0_i32 : i32, i32
  }
}

</mosaic_0001>

<llo_original>
// kernel: tpu_custom_call.1
$region0: #{tpu_custom_call.1}
  #allocation0 [shape = 'u32[]', space=smem, size = 0x4, offset = 0x4, fixed_abs, tag = 'smem constant byte address 0x4 - core index']
  #allocation1 [shape = 'u32[72,128]{1,0:T(1,128)}', space=vmem, size = 0x9000, scoped, tag = 'internal scratch']
  %s0 = inlined_call_operand.hbm [shape: f32[2,1024], index: 0, kind: input, shape index: {}]
  %s1 = inlined_call_operand.hbm [shape: f32[2,1024], index: 1, kind: output, shape index: {}]
  %s2 = sld [smem:[#allocation0]]
  $region18: #{tpu_custom_call.1} parent=0
    _
  %s4 = ssub.s32 1, %s2
  %s5 = scalar_select 0, %s4, %s2
  $region1: #{tpu_custom_call.1} parent=0
    #allocation2 [shape = 'u8[8192]{0}', space=vmem, size = 0x2000, scoped, tag = 'input window, operand 0, single buffered']
    #allocation3 [shape = 's32[1]{0}', space=sflag, size = 0x4, scoped, tag = 'scoped memory for tpu_custom_call.1']
    #allocation4 [shape = 's32[1]{0}', space=sflag, size = 0x4, scoped, tag = 'scoped memory for tpu_custom_call.1']
    #allocation5 [shape = 'u8[8192]{0}', space=vmem, size = 0x2000, scoped, tag = 'output window, operand 0, single buffered']
    %6 = vsyncpa [#allocation3], 0
    %7 = vsyncpa [#allocation4], 0
    // Predicated region
    $region2: #{tpu_custom_call.1} parent=1 // pred_check
      _
    $region3: #{tpu_custom_call.1} parent=1 // pred_check_branch
      %9 = sbr.rel (0) target = $region5
    $region4: #{tpu_custom_call.1} parent=1 // pred_region
      %11 = vsyncadd [#allocation3], 0
      %s13 = sshll.u32 %s0, 4
      %s14 = int_to_ptr.hbm [resolvable:$true] %s13
      %s15 = sshll.u32 [#allocation2], 4
      %s16 = int_to_ptr.vmem [resolvable:$true] %s15
      %18 = dma.hbm_to_vmem [thread:$0]  %s14, 256, %s16, [#allocation3]
    $region5: #{tpu_custom_call.1} parent=1 // pred_fallthru
      _
    // Predicated region
    $region6: #{tpu_custom_call.1} parent=1 // pred_check
      _
    $region7: #{tpu_custom_call.1} parent=1 // pred_check_branch
      %20 = sbr.rel (0) target = $region9
    $region8: #{tpu_custom_call.1} parent=1 // pred_region
      %22 = dma.done [#allocation3], 256
    $region9: #{tpu_custom_call.1} parent=1 // pred_fallthru
      _
    %v23 = vld [vmem:[#allocation2] sm:$0xff]
    %v24 = vld [vmem:[#allocation2 + $0x8] sm:$0xff]
    %v25 = vmin.f32 %v23, 20.0
    %v26 = vmin.f32 %v24, 20.0
    %v27 = vmul.f32 %v25, 1.442695
    %v28 = vpow.pop %v27
    %v29 = vmul.f32 %v26, 1.442695
    %v30 = vpow.pop %v29
    %v31 = vadd.f32 %v28, 2.0
    %v32 = vadd.f32 %v30, 2.0
    %v33 = vmul.f32 %v28, %v31
    %v34 = vmul.f32 %v30, %v32
    %v35 = vadd.f32 %v33, 2.0
    %v36 = vadd.f32 %v34, 2.0
    %v37 = vrcp.pop %v35
    %v38 = vrcp.pop %v36
    %v39 = vmul.f32 %v35, %v37
    %v40 = vmul.f32 %v36, %v38
    %v41 = vsub.f32 2.0, %v39
    %v42 = vsub.f32 2.0, %v40
    %v43 = vmul.f32 %v37, %v41
    %v44 = vmul.f32 %v38, %v42
    %v45 = vmul.f32 %v35, %v43
    %v46 = vmul.f32 %v36, %v44
    %v47 = vsub.f32 2.0, %v45
    %v48 = vsub.f32 2.0, %v46
    %v49 = vmul.f32 %v43, %v47
    %v50 = vmul.f32 %v44, %v48
    %vm51 = vcmp.gt.f32.partialorder %v23, 20.0
    %vm52 = vcmp.gt.f32.partialorder %v24, 20.0
    %v53 = vmul.f32 %v33, %v49
    %v54 = vmul.f32 %v34, %v50
    %v55 = vmul.f32 %v23, %v53
    %v56 = vmul.f32 %v24, %v54
    %v57 = vsel %vm51, %v23, %v55
    %v58 = vsel %vm52, %v24, %v56
    %59 = vst [vmem:[#allocation5] sm:$0xff] %v57
    %60 = vst [vmem:[#allocation5 + $0x8] sm:$0xff] %v58
    // Predicated region
    $region10: #{tpu_custom_call.1} parent=1 // pred_check
      _
    $region11: #{tpu_custom_call.1} parent=1 // pred_check_branch
      %62 = sbr.rel (0) target = $region13
    $region12: #{tpu_custom_call.1} parent=1 // pred_region
      %64 = vsyncadd [#allocation4], 0
      %s66 = sshll.u32 [#allocation5], 4
      %s67 = int_to_ptr.vmem [resolvable:$true] %s66
      %s68 = sshll.u32 %s1, 4
      %s69 = int_to_ptr.hbm [resolvable:$true] %s68
      %71 = dma.vmem_to_hbm [thread:$0]  %s67, 256, %s69, [#allocation4]
    $region13: #{tpu_custom_call.1} parent=1 // pred_fallthru
      _
    // Predicated region
    $region14: #{tpu_custom_call.1} parent=1 // pred_check
      _
    $region15: #{tpu_custom_call.1} parent=1 // pred_check_branch
      %73 = sbr.rel (0) target = $region17
    $region16: #{tpu_custom_call.1} parent=1 // pred_region
      %75 = dma.done [#allocation4], 256
    $region17: #{tpu_custom_call.1} parent=1 // pred_fallthru
      _
    %76 = vsyncpa [#allocation3], 1
    %77 = vsyncpa [#allocation4], 1

</llo_original>
